<compile_context>
chip_gen: v5e
topology: v5e:2x2
jax: 0.10.0
libtpu: 0.0.40
codegen_flags: <defaults>
</compile_context>

<pallas_src>
import functools

import jax
import jax.numpy as jnp
from jax.experimental import pallas as pl
from jax.experimental.pallas import tpu as pltpu


_LANES = 128          # lane width of a vreg
_BLOCK_ROWS = 512     # (512, 128) f32 block = 256 KiB; 2x double-buffered ~1 MiB VMEM
_SMALL_MAX = 1024     # below this, a gridless un-padded call is cheapest


def _hybrid_kernel(theta_ref, out_ref, *, a):
    # Elementwise: expectation = a + a * sin(theta), a = 0.5 * state_sum.
    out_ref[...] = a + a * jnp.sin(theta_ref[...])


class HybridPallas:
    """Pallas equivalent of the Hybrid nn.Module (forward only)."""

    def __init__(self, n_qubits, shots=100, shift=jnp.pi / 2):
        # No trainable parameters; n_qubits fixes the circuit.
        self.n_qubits = int(n_qubits)
        self.shots = shots          # unused in forward (analytic expectation)
        self.shift = shift          # only used by the original backward pass
        # sum_{k=0}^{n-1} 10^k  ("decimal-read binary string" weighting)
        state_sum = (10.0 ** self.n_qubits - 1.0) / 9.0
        # folded constant: out = a + a*sin(theta)
        self._a = float(0.5 * state_sum)

    def __call__(self, x):
        # Mimic the torch squeeze logic of Hybrid.forward.
        if x.shape != (1, 1):
            theta = jnp.squeeze(x)
        else:
            theta = x[0]
        theta = theta.reshape(-1).astype(jnp.float32)
        b = theta.shape[0]
        kernel = functools.partial(_hybrid_kernel, a=self._a)

        if b <= _SMALL_MAX:
            # ---- small / typical path ---------------------------------------
            # No padding, no alias, one gridless full-array VMEM block.  The
            # [B] -> [1, B] reshape is metadata-only; masked stores at this
            # size are irrelevant.  Output is already the final [1, B] shape.
            return pl.pallas_call(
                kernel,
                out_shape=jax.ShapeDtypeStruct((1, b), jnp.float32),
                in_specs=[pl.BlockSpec(memory_space=pltpu.MemorySpace.VMEM)],
                out_specs=pl.BlockSpec(memory_space=pltpu.MemorySpace.VMEM),
            )(theta.reshape(1, b))

        # ---- large-batch path ------------------------------------------------
        # Pad only to the next lane multiple (<= 127 extra elements) and present
        # a lane-dense [rows, 128] slab; tile the sublane axis over a parallel
        # 1-D grid so v7x shards across both TensorCores and VMEM stays bounded
        # on v5e / v6e / v7x.  allow_input_fusion lets XLA fuse the pad/reshape
        # producer directly into the pallas_call input (no HBM round-trip).
        rows = pl.cdiv(b, _LANES)
        padded = rows * _LANES
        theta_slab = jnp.pad(theta, (0, padded - b)).reshape(rows, _LANES)

        block_rows = min(_BLOCK_ROWS, rows)   # full-dim block if rows < 512
        out_slab = pl.pallas_call(
            kernel,
            out_shape=jax.ShapeDtypeStruct((rows, _LANES), jnp.float32),
            grid=(pl.cdiv(rows, block_rows),),
            in_specs=[pl.BlockSpec((block_rows, _LANES), lambda i: (i, 0))],
            out_specs=pl.BlockSpec((block_rows, _LANES), lambda i: (i, 0)),
            compiler_params=pltpu.CompilerParams(
                dimension_semantics=("parallel",),
                allow_input_fusion=[True],
            ),
        )(theta_slab)

        # matches torch.tensor([expectation_z]) -> shape [1, B]
        return out_slab.reshape(-1)[:b].reshape(1, b)


def _reference(x, n_qubits):
    if x.shape != (1, 1):
        theta = jnp.squeeze(x)
    else:
        theta = x[0]
    theta = theta.reshape(-1).astype(jnp.float32)
    state_sum = (10.0 ** n_qubits - 1.0) / 9.0
    exp = 0.5 * (1.0 + jnp.sin(theta)) * state_sum
    return exp.reshape(1, -1)


if __name__ == "__main__":
    key = jax.random.PRNGKey(0)
    n_qubits = 1  # QNN4EO uses Hybrid(1, backend, 100, shift)
    layer = HybridPallas(n_qubits=n_qubits, shots=100, shift=jnp.pi / 2)

    # --- typical case: [B, 1] output of the preceding fc layer (small path) ---
    batch = 2
    x = jax.random.normal(key, (batch, 1), dtype=jnp.float32)
    out = jax.block_until_ready(layer(x))
    ref = _reference(x, n_qubits)
    assert out.shape == (1, batch), out.shape
    assert jnp.allclose(out, ref, atol=1e-5, rtol=1e-5), (out, ref)

    # --- (1,1) special-case branch (small path) ---
    x1 = jax.random.normal(key, (1, 1), dtype=jnp.float32)
    out1 = jax.block_until_ready(layer(x1))
    ref1 = _reference(x1, n_qubits)
    assert out1.shape == (1, 1), out1.shape
    assert jnp.allclose(out1, ref1, atol=1e-5, rtol=1e-5), (out1, ref1)

    # --- exercise the tiled (parallel-grid) large-batch path ---
    # 70000 elements (~280 KB): rows=547 -> grid=2 blocks of (512,128) with a
    # partial final block and 48 padded elements; still tiny in memory.
    big = 70_000
    xb = jax.random.normal(key, (big, 1), dtype=jnp.float32)
    outb = jax.block_until_ready(layer(xb))
    refb = _reference(xb, n_qubits)
    assert outb.shape == (1, big), outb.shape
    assert jnp.allclose(outb, refb, atol=1e-5, rtol=1e-5)

    print("KERNEL_OK")
</pallas_src>

<mosaic_0001>
module attributes {stable_mosaic.version = 11 : i64} {
  func.func @_hybrid_kernel(%arg0: memref<1x2xf32, #tpu.memory_space<vmem>>, %arg1: memref<1x2xf32, #tpu.memory_space<vmem>>) attributes {dimension_semantics = [], scalar_prefetch = 0 : i64, scratch_operands = 0 : i64, tpu.core_type = #tpu.core_type<tc>} {
    %c0 = arith.constant 0 : index
    %c0_0 = arith.constant 0 : index
    %0 = vector.load %arg0[%c0, %c0_0] : memref<1x2xf32, #tpu.memory_space<vmem>>, vector<1x2xf32>
    %1 = math.sin %0 : vector<1x2xf32>
    %cst = arith.constant 5.000000e-01 : f32
    %2 = vector.broadcast %cst : f32 to vector<1x2xf32>
    %3 = arith.mulf %2, %1 : vector<1x2xf32>
    %cst_1 = arith.constant 5.000000e-01 : f32
    %4 = vector.broadcast %cst_1 : f32 to vector<1x2xf32>
    %5 = arith.addf %4, %3 : vector<1x2xf32>
    %c0_2 = arith.constant 0 : index
    %c0_3 = arith.constant 0 : index
    %6 = vector.load %arg1[%c0_2, %c0_3] : memref<1x2xf32, #tpu.memory_space<vmem>>, vector<1x2xf32>
    tpu.vector_store %arg1[%c0_2, %c0_3], %5 {strides = array<i32>} : memref<1x2xf32, #tpu.memory_space<vmem>>, vector<1x2xf32>,
    return
  }
}

</mosaic_0001>

<llo_original>
// kernel: tpu_custom_call.1
$region0: #{tpu_custom_call.1}
  #allocation0 [shape = 'u32[]', space=smem, size = 0x4, offset = 0x4, fixed_abs, tag = 'smem constant byte address 0x4 - core index']
  #allocation1 [shape = 'u32[72,128]{1,0:T(1,128)}', space=vmem, size = 0x9000, scoped, tag = 'internal scratch']
  %s0 = inlined_call_operand.hbm [shape: f32[1,2], index: 0, kind: input, shape index: {}]
  %s1 = inlined_call_operand.hbm [shape: f32[1,2], index: 1, kind: output, shape index: {}]
  %s2 = sld [smem:[#allocation0]]
  $region18: #{tpu_custom_call.1} parent=0
    _
  %s4 = ssub.s32 1, %s2
  %s5 = scalar_select 0, %s4, %s2
  $region1: #{tpu_custom_call.1} parent=0
    #allocation2 [shape = 'u8[512]{0}', space=vmem, size = 0x400, scoped, tag = 'input window, operand 0, single buffered']
    #allocation3 [shape = 's32[1]{0}', space=sflag, size = 0x4, scoped, tag = 'scoped memory for tpu_custom_call.1']
    #allocation4 [shape = 's32[1]{0}', space=sflag, size = 0x4, scoped, tag = 'scoped memory for tpu_custom_call.1']
    #allocation5 [shape = 'u8[512]{0}', space=vmem, size = 0x400, scoped, tag = 'output window, operand 0, single buffered']
    %6 = vsyncpa [#allocation3], 0
    %7 = vsyncpa [#allocation4], 0
    // Predicated region
    $region2: #{tpu_custom_call.1} parent=1 // pred_check
      _
    $region3: #{tpu_custom_call.1} parent=1 // pred_check_branch
      %9 = sbr.rel (0) target = $region5
    $region4: #{tpu_custom_call.1} parent=1 // pred_region
      %11 = vsyncadd [#allocation3], 0
      %s13 = sshll.u32 %s0, 4
      %s14 = int_to_ptr.hbm [resolvable:$true] %s13
      %s15 = sshll.u32 [#allocation2], 4
      %s16 = int_to_ptr.vmem [resolvable:$true] %s15
      %18 = dma.hbm_to_vmem [thread:$0]  %s14, 16, %s16, [#allocation3]
    $region5: #{tpu_custom_call.1} parent=1 // pred_fallthru
      _
    // Predicated region
    $region6: #{tpu_custom_call.1} parent=1 // pred_check
      _
    $region7: #{tpu_custom_call.1} parent=1 // pred_check_branch
      %20 = sbr.rel (0) target = $region9
    $region8: #{tpu_custom_call.1} parent=1 // pred_region
      %22 = dma.done [#allocation3], 16
    $region9: #{tpu_custom_call.1} parent=1 // pred_fallthru
      _
    %v23 = vld [vmem:[#allocation2] sm:$0x1]
    %v24 = vand.u32 2147483647, %v23
    %vm25 = vcmp.le.f32.partialorder %v24, 0.7853982
    %vm26 = vcmp.lt.s32.totalorder %v23, 0
    %v27 = vand.u32 %v23, 2139095040
    %v28 = vshrl.u32 %v27, 23
    %v29 = vsub.s32 %v28, 127
    %v30 = vand.u32 2147483647, %v23
    %v31 = vand.u32 %v30, 8388607
    %v32 = vor.u32 %v31, 8388608
    %v33 = vsub.s32 0, %v32
    %v34 = vadd.s32 %v29, 1
    %vm35 = vcmp.gt.s32.totalorder %v34, 0
    %v36 = vsel %vm35, %v34, 0
    %v37 = vshrl.u32 %v36, 5
    %v38 = vand.u32 %v36, 31
    %v39 = vsub.s32 32, %v38
    %v40 = vshrl.u32 683565275, %v39
    %v41 = vshll.u32 683565275, %v38
    %v42 = vshrl.u32 2475754826, %v39
    %v43 = vor.u32 %v41, %v42
    %v44 = vshll.u32 2475754826, %v38
    %v45 = vshrl.u32 2131351028, %v39
    %v46 = vor.u32 %v44, %v45
    %v47 = vshll.u32 2131351028, %v38
    %v48 = vshrl.u32 2102212464, %v39
    %v49 = vor.u32 %v47, %v48
    %v50 = vshll.u32 2102212464, %v38
    %v51 = vshrl.u32 920167782, %v39
    %v52 = vor.u32 %v50, %v51
    %v53 = vshll.u32 920167782, %v38
    %v54 = vshrl.u32 1326507024, %v39
    %v55 = vor.u32 %v53, %v54
    %vm56 = vcmp.lt.s32.totalorder %v37, 1
    %vm57 = vcmp.lt.s32.totalorder %v37, 2
    %vm58 = vcmp.lt.s32.totalorder %v37, 3
    %vm59 = vcmp.lt.s32.totalorder %v37, 4
    %v60 = vsel %vm56, %v40, %v43
    %v61 = vsel %vm59, %v49, 2102212464
    %v62 = vsel %vm58, %v46, %v61
    %v63 = vsel %vm57, %v60, %v62
    %v64 = vsel %vm56, %v43, %v46
    %v65 = vsel %vm59, %v52, 920167782
    %v66 = vsel %vm58, %v49, %v65
    %v67 = vsel %vm57, %v64, %v66
    %v68 = vsel %vm56, %v46, %v49
    %v69 = vsel %vm59, %v55, 1326507024
    %v70 = vsel %vm58, %v52, %v69
    %v71 = vsel %vm57, %v68, %v70
    %v72 = vshll.u32 %v32, 8
    %v73 = vand.u32 %v72, 65535
    %v74 = vshrl.u32 %v72, 16
    %v75 = vand.u32 %v71, 65535
    %v76 = vshrl.u32 %v71, 16
    %v77 = vmul.u32 %v73, %v75
    %v78 = vmul.u32 %v73, %v76
    %v79 = vmul.u32 %v74, %v75
    %v80 = vmul.u32 %v74, %v76
    %v81 = vshll.u32 %v78, 16
    %v82 = vshrl.u32 %v78, 16
    %v83 = vshll.u32 %v79, 16
    %v84 = vshrl.u32 %v79, 16
    %vm85 = vc.u32 %v77, %v81
    %v86 = vsel %vm85, 1, 0
    %v87 = vadd.s32 %v77, %v81
    %v88 = vadd.s32 %v80, %v86
    %vm89 = vc.u32 %v87, %v83
    %v90 = vsel %vm89, 1, 0
    %v91 = vadd.s32 %v87, %v83
    %v92 = vadd.s32 %v88, %v90
    %v93 = vadd.s32 %v92, %v82
    %v94 = vadd.s32 %v93, %v84
    %v95 = vand.u32 %v72, 65535
    %v96 = vshrl.u32 %v72, 16
    %v97 = vand.u32 %v67, 65535
    %v98 = vshrl.u32 %v67, 16
    %v99 = vmul.u32 %v95, %v97
    %v100 = vmul.u32 %v95, %v98
    %v101 = vmul.u32 %v96, %v97
    %v102 = vmul.u32 %v96, %v98
    %v103 = vshll.u32 %v100, 16
    %v104 = vshrl.u32 %v100, 16
    %v105 = vshll.u32 %v101, 16
    %v106 = vshrl.u32 %v101, 16
    %vm107 = vc.u32 %v99, %v103
    %v108 = vsel %vm107, 1, 0
    %v109 = vadd.s32 %v99, %v103
    %v110 = vadd.s32 %v102, %v108
    %vm111 = vc.u32 %v109, %v105
    %v112 = vsel %vm111, 1, 0
    %v113 = vadd.s32 %v109, %v105
    %v114 = vadd.s32 %v110, %v112
    %v115 = vadd.s32 %v114, %v104
    %v116 = vadd.s32 %v115, %v106
    %v117 = vmul.u32 %v72, %v63
    %v118 = vadd.s32 %v94, %v113
    %vm119 = vc.u32 %v94, %v113
    %v120 = vadd.s32 %v116, 1
    %v121 = vsel %vm119, %v120, %v116
    %v122 = vadd.s32 %v117, %v121
    %v123 = vadd.s32 %v122, 536870912
    %v124 = vshrl.u32 %v123, 30
    %v125 = vshll.u32 %v124, 30
    %v126 = vsub.s32 %v122, %v125
    %vm127 = vcmp.lt.s32.totalorder %v126, 0
    %v128 = vsub.s32 0, %v126
    %v129 = vsel %vm127, %v128, %v126
    %v130 = vclz %v129
    %v131 = vsub.s32 %v130, 2
    %vm132 = vcmp.gt.s32.totalorder 0, %v131
    %v133 = vsel %vm132, 0, %v131
    %v134 = vsub.s32 32, %v133
    %v135 = vshll.u32 %v126, %v133
    %v136 = vshrl.u32 %v118, %v134
    %v137 = vor.u32 %v135, %v136
    %v138 = vsub.s32 4294967266, %v133
    %v139 = vadd.s32 %v138, 127
    %v140 = vshll.u32 %v139, 23
    %v141 = vor.u32 4788187, %v140
    %v142 = vand.u32 2147483647, %v141
    %v144 = vcvt.s32.f32 %v137
    %v145 = vmul.f32 %v144, %v142
    %v146 = vxor.u32 %v145, 2147483648
    %v147 = vsel %vm26, %v146, %v145
    %v148 = vsub.s32 4, %v124
    %v149 = vsel %vm26, %v148, %v124
    %v150 = vsel %vm25, %v23, %v147
    %v151 = vsel %vm25, 0, %v149
    %v152 = vmul.f32 %v150, %v150
    %v153 = vmul.f32 %v152, -0.001358992
    %v154 = vadd.f32 %v153, 0.041655596
    %v155 = vmul.f32 %v152, %v154
    %v156 = vadd.f32 %v155, -0.4999988
    %v157 = vmul.f32 %v152, %v156
    %v158 = vadd.f32 1.0, %v157
    %v159 = vmul.f32 %v150, %v150
    %v160 = vmul.f32 %v159, -0.00019511016
    %v161 = vadd.f32 %v160, 0.008332121
    %v162 = vmul.f32 %v159, %v161
    %v163 = vadd.f32 %v162, -0.16666654
    %v164 = vmul.f32 %v159, %v163
    %v165 = vadd.f32 %v164, 1.0
    %v166 = vmul.f32 %v165, %v150
    %vm167 = vweird.f32 %v23
    %v168 = vadd.s32 %v151, 3
    %v169 = vand.u32 %v168, 3
    %vm170 = vcmp.lt.s32.totalorder %v169, 2
    %vm171 = vcmp.eq.s32.totalorder %v169, 0
    %v172 = vxor.u32 %v166, 2147483648
    %v173 = vsel %vm171, %v158, %v172
    %vm174 = vcmp.eq.s32.totalorder %v169, 2
    %v175 = vxor.u32 %v158, 2147483648
    %v176 = vsel %vm174, %v175, %v166
    %v177 = vsel %vm170, %v173, %v176
    %v178 = vsel %vm167, nan, %v177
    %v179 = vmul.f32 %v178, 0.5
    %v180 = vadd.f32 %v179, 0.5
    %vm181 = vcmask 8192
    %182 = vst.msk [vmem:[#allocation5] sm:$0x1] %vm181, %v180
    // Predicated region
    $region10: #{tpu_custom_call.1} parent=1 // pred_check
      _
    $region11: #{tpu_custom_call.1} parent=1 // pred_check_branch
      %184 = sbr.rel (0) target = $region13
    $region12: #{tpu_custom_call.1} parent=1 // pred_region
      %186 = vsyncadd [#allocation4], 0
      %s188 = sshll.u32 [#allocation5], 4
      %s189 = int_to_ptr.vmem [resolvable:$true] %s188
      %s190 = sshll.u32 %s1, 4
      %s191 = int_to_ptr.hbm [resolvable:$true] %s190
      %193 = dma.vmem_to_hbm [thread:$0]  %s189, 16, %s191, [#allocation4]
    $region13: #{tpu_custom_call.1} parent=1 // pred_fallthru
      _
    // Predicated region
    $region14: #{tpu_custom_call.1} parent=1 // pred_check
      _
    $region15: #{tpu_custom_call.1} parent=1 // pred_check_branch
      %195 = sbr.rel (0) target = $region17
    $region16: #{tpu_custom_call.1} parent=1 // pred_region
      %197 = dma.done [#allocation4], 16
    $region17: #{tpu_custom_call.1} parent=1 // pred_fallthru
      _
    %198 = vsyncpa [#allocation3], 1
    %199 = vsyncpa [#allocation4], 1

</llo_original>
